<compile_context>
chip_gen: v7x
topology: tpu7x:2x2x1
jax: 0.10.0
libtpu: 0.0.40
codegen_flags: <defaults>
</compile_context>

<pallas_src>
import functools

import jax
import jax.numpy as jnp
from jax import lax
from jax.experimental import pallas as pl
from jax.experimental.pallas import tpu as pltpu

_MASK_VALUE = -1e30
# Stay within the default scoped-VMEM budget of every current chip
# (v5e: 16 MiB default / 128 MiB phys, v6e: 32/128, v7x: 32/64).
_VMEM_LIMIT = 32 * 1024 * 1024
_VMEM_BUDGET = 24 * 1024 * 1024  # headroom target when picking row tiles


def _round_up(x, m):
    return ((x + m - 1) // m) * m


# --------------------------- projection kernels -----------------------------

def _proj_bias_kernel(x_ref, w_ref, b_ref, o_ref):
    # x_ref: (tm, K) bf16 ; w_ref: (K, N) bf16 ; b_ref: (1, N) f32
    y = jnp.dot(x_ref[...], w_ref[...], preferred_element_type=jnp.float32)
    o_ref[...] = (y + b_ref[...]).astype(o_ref.dtype)


def _proj_nobias_kernel(x_ref, w_ref, o_ref):
    y = jnp.dot(x_ref[...], w_ref[...], preferred_element_type=jnp.float32)
    o_ref[...] = y.astype(o_ref.dtype)


def _pick_row_tile(Mp, Kp, Np, in_itemsize, out_itemsize):
    """Largest row tile (<=512) whose double-buffered VMEM footprint fits."""
    for tm in (512, 256, 128, 64, 32, 16, 8):
        if tm > Mp:
            continue
        vmem = (2 * tm * Kp * in_itemsize          # x tile, double buffered
                + 2 * Kp * Np * in_itemsize        # resident weights
                + 2 * Np * 4                       # bias
                + 2 * tm * Np * out_itemsize)      # output tile
        if vmem <= _VMEM_BUDGET:
            return tm
    return 8


def _proj(x2, w, b, *, out_dtype):
    """x2: (M, K), w: (K, N), b: (N,) or None -> (M, N). bf16 MXU, f32 acc."""
    M, K = x2.shape
    N = w.shape[1]

    # Pad contraction / output dims to lane multiples (128): lane-dense
    # unmasked stores and MXU-aligned tiles.  Zero padding is exact.
    Kp, Np = _round_up(K, 128), _round_up(N, 128)
    if Kp != K:
        x2 = jnp.pad(x2, ((0, 0), (0, Kp - K)))
    if Kp != K or Np != N:
        w = jnp.pad(w, ((0, Kp - K), (0, Np - N)))

    # Row tiling: pipelined grid over tokens; weights stay resident.
    Mp = _round_up(M, 8)
    tm = _pick_row_tile(Mp, Kp, Np, x2.dtype.itemsize,
                        jnp.dtype(out_dtype).itemsize)
    Mp = _round_up(Mp, tm)
    if Mp != M:
        x2 = jnp.pad(x2, ((0, Mp - M), (0, 0)))

    has_bias = b is not None
    if has_bias:
        b2 = jnp.pad(b.astype(jnp.float32), ((0, Np - N),)).reshape(1, Np)
        kernel = _proj_bias_kernel
        in_specs = [
            pl.BlockSpec((tm, Kp), lambda i: (i, 0)),
            pl.BlockSpec((Kp, Np), lambda i: (0, 0)),   # resident weights
            pl.BlockSpec((1, Np), lambda i: (0, 0)),    # resident bias
        ]
        args = (x2, w, b2)
    else:
        kernel = _proj_nobias_kernel
        in_specs = [
            pl.BlockSpec((tm, Kp), lambda i: (i, 0)),
            pl.BlockSpec((Kp, Np), lambda i: (0, 0)),   # resident weights
        ]
        args = (x2, w)

    out = pl.pallas_call(
        kernel,
        out_shape=jax.ShapeDtypeStruct((Mp, Np), out_dtype),
        grid_spec=pltpu.PrefetchScalarGridSpec(
            num_scalar_prefetch=0,
            grid=(Mp // tm,),
            in_specs=in_specs,
            out_specs=pl.BlockSpec((tm, Np), lambda i: (i, 0)),
        ),
        compiler_params=pltpu.CompilerParams(
            dimension_semantics=("parallel",),
            vmem_limit_bytes=_VMEM_LIMIT,
        ),
        cost_estimate=pl.CostEstimate(
            flops=2 * Mp * Kp * Np,
            transcendentals=0,
            bytes_accessed=(Mp * Kp + Kp * Np) * x2.dtype.itemsize
            + Mp * Np * jnp.dtype(out_dtype).itemsize,
        ),
    )(*args)
    return out[:M, :N]


# ------------------------ flash attention kernel ---------------------------

def _attn_kernel(q_ref, k_ref, v_ref, o_ref, m_sc, l_sc, acc_sc, *,
                 scale, n_kv, mask_kv):
    kv = pl.program_id(2)

    @pl.when(kv == 0)
    def _():
        m_sc[...] = jnp.full_like(m_sc, _MASK_VALUE)
        l_sc[...] = jnp.zeros_like(l_sc)
        acc_sc[...] = jnp.zeros_like(acc_sc)

    # scores (1, tq, tk) in f32 on the MXU (bf16 operands).
    s = jnp.einsum("bqd,bkd->bqk", q_ref[...], k_ref[...],
                   preferred_element_type=jnp.float32) * scale
    if mask_kv:  # static: only emitted when the kv dim was actually padded
        tk = k_ref.shape[1]
        kv_pos = kv * tk + lax.broadcasted_iota(jnp.int32, s.shape, 2)
        s = jnp.where(kv_pos < n_kv, s, _MASK_VALUE)

    m_prev = m_sc[...]                                            # (1, tq, 1)
    m_new = jnp.maximum(m_prev, s.max(axis=-1, keepdims=True))
    alpha = jnp.exp(m_prev - m_new)
    p = jnp.exp(s - m_new)
    l_sc[...] = alpha * l_sc[...] + p.sum(axis=-1, keepdims=True)
    acc_sc[...] = alpha * acc_sc[...] + jnp.einsum(
        "bqk,bkd->bqd", p.astype(v_ref.dtype), v_ref[...],
        preferred_element_type=jnp.float32)
    m_sc[...] = m_new

    @pl.when(kv == pl.num_programs(2) - 1)
    def _():
        o_ref[...] = (acc_sc[...] * pl.reciprocal(l_sc[...], approx=True)
                      ).astype(o_ref.dtype)


def _flash_attention(q, k, v, *, scale, n_kv):
    """q, k, v: (B*H, Np, dh) bf16 (Np padded); returns (B*H, Np, dh) bf16."""
    BH, Np, dh = q.shape
    t = min(128, Np)
    assert Np % t == 0
    nq = nkv = Np // t

    kernel = functools.partial(_attn_kernel, scale=scale, n_kv=n_kv,
                               mask_kv=(Np != n_kv))
    return pl.pallas_call(
        kernel,
        out_shape=jax.ShapeDtypeStruct((BH, Np, dh), q.dtype),
        grid_spec=pltpu.PrefetchScalarGridSpec(
            num_scalar_prefetch=0,
            grid=(BH, nq, nkv),
            in_specs=[
                pl.BlockSpec((1, t, dh), lambda b, i, j: (b, i, 0)),
                pl.BlockSpec((1, t, dh), lambda b, i, j: (b, j, 0)),
                pl.BlockSpec((1, t, dh), lambda b, i, j: (b, j, 0)),
            ],
            out_specs=pl.BlockSpec((1, t, dh), lambda b, i, j: (b, i, 0)),
            scratch_shapes=[
                pltpu.VMEM((1, t, 1), jnp.float32),    # running max
                pltpu.VMEM((1, t, 1), jnp.float32),    # running denom
                pltpu.VMEM((1, t, dh), jnp.float32),   # output accumulator
            ],
        ),
        compiler_params=pltpu.CompilerParams(
            dimension_semantics=("parallel", "parallel", "arbitrary"),
            vmem_limit_bytes=_VMEM_LIMIT,
        ),
        cost_estimate=pl.CostEstimate(
            flops=4 * BH * Np * Np * dh,
            transcendentals=BH * Np * Np,
            bytes_accessed=4 * BH * Np * dh * q.dtype.itemsize,
        ),
    )(q, k, v)


# ------------------------------ full module --------------------------------

def ceit_attention(x, w_qkv, w_out, b_out, *, heads, dim_head):
    """x: (B, N, D); w_qkv: (D, 3*heads*dim_head) (= torch to_qkv.weight.T);
    w_out: (heads*dim_head, D) (= torch to_out[0].weight.T) or None; b_out: (D,).
    """
    B, N, D = x.shape
    inner = heads * dim_head
    scale = float(dim_head) ** -0.5
    out_dtype = x.dtype
    cdt = jnp.bfloat16   # MXU operand dtype; accumulation stays f32

    # 1) QKV projection (no bias).
    qkv = _proj(x.reshape(B * N, D).astype(cdt), w_qkv.astype(cdt), None,
                out_dtype=cdt)                                  # (B*N, 3*inner)

    # 2) split into heads -- layout plumbing stays in XLA, not in the kernel.
    qkv = qkv.reshape(B, N, 3 * inner)
    q, k, v = jnp.split(qkv, 3, axis=-1)

    def to_heads(t):
        return (t.reshape(B, N, heads, dim_head)
                 .transpose(0, 2, 1, 3)
                 .reshape(B * heads, N, dim_head))

    q, k, v = map(to_heads, (q, k, v))

    Np = _round_up(N, 8)
    tile = min(128, Np)
    Np = _round_up(Np, tile)
    if Np != N:
        pad = ((0, 0), (0, Np - N), (0, 0))
        q, k, v = (jnp.pad(a, pad) for a in (q, k, v))

    o = _flash_attention(q, k, v, scale=scale, n_kv=N)          # (B*H, Np, dh)

    o = (o[:, :N, :]
         .reshape(B, heads, N, dim_head)
         .transpose(0, 2, 1, 3)
         .reshape(B * N, inner))

    if w_out is None:                      # project_out == False -> Identity
        return o.astype(out_dtype).reshape(B, N, inner)

    # 3) output projection (+ bias); Dropout(p=0) is identity.
    y = _proj(o, w_out.astype(cdt), b_out, out_dtype=out_dtype)
    return y.reshape(B, N, D)


# ------------------------------ reference ----------------------------------

def ceit_attention_ref(x, w_qkv, w_out, b_out, *, heads, dim_head):
    B, N, D = x.shape
    inner = heads * dim_head
    qkv = jnp.einsum("bnd,de->bne", x, w_qkv)
    q, k, v = jnp.split(qkv, 3, axis=-1)

    def to_heads(t):
        return t.reshape(B, N, heads, dim_head).transpose(0, 2, 1, 3)

    q, k, v = map(to_heads, (q, k, v))
    dots = jnp.einsum("bhqd,bhkd->bhqk", q, k) * (float(dim_head) ** -0.5)
    attn = jax.nn.softmax(dots, axis=-1)
    o = jnp.einsum("bhqk,bhkd->bhqd", attn, v)
    o = o.transpose(0, 2, 1, 3).reshape(B, N, inner)
    if w_out is None:
        return o
    return jnp.einsum("bne,ed->bnd", o, w_out) + b_out


if __name__ == "__main__":
    key = jax.random.PRNGKey(0)
    B, N, D = 2, 8, 32          # batch, seq, dim
    heads, dim_head = 4, 16     # inner_dim = 64, project_out = True
    inner = heads * dim_head

    kx, kq, ko, kb = jax.random.split(key, 4)
    x = jax.random.normal(kx, (B, N, D), dtype=jnp.float32)
    # Weights stored transposed relative to torch's (out, in) convention.
    w_qkv = jax.random.normal(kq, (D, 3 * inner), dtype=jnp.float32) * 0.02
    w_out = jax.random.normal(ko, (inner, D), dtype=jnp.float32) * 0.02
    b_out = jax.random.normal(kb, (D,), dtype=jnp.float32) * 0.02

    y = ceit_attention(x, w_qkv, w_out, b_out, heads=heads, dim_head=dim_head)
    y = jax.block_until_ready(y)

    y_ref = ceit_attention_ref(x, w_qkv, w_out, b_out,
                               heads=heads, dim_head=dim_head)
    assert y.shape == (B, N, D)
    # bf16 MXU operands with f32 accumulation -> wider tolerance vs pure-f32 ref.
    assert jnp.allclose(y, y_ref, atol=2e-2, rtol=2e-2), (
        f"mismatch vs reference: max abs err {jnp.max(jnp.abs(y - y_ref))}")

    print("KERNEL_OK")
</pallas_src>

<mosaic_0001>
module attributes {stable_mosaic.version = 11 : i64} {
  func.func @_proj_nobias_kernel(%arg0: i32, %arg1: memref<16x128xbf16, #tpu.memory_space<vmem>>, %arg2: memref<128x256xbf16, #tpu.memory_space<vmem>>, %arg3: memref<16x256xbf16, #tpu.memory_space<vmem>>) attributes {dimension_semantics = [#tpu.dimension_semantics<parallel>], iteration_bounds = array<i64: 1>, scalar_prefetch = 0 : i64, scratch_operands = 0 : i64, tpu.core_type = #tpu.core_type<tc>, window_params = [{transform_indices = @transform_0, window_bounds = array<i64: 16, 128>}, {pipeline_mode = #tpu.pipeline_mode<synchronous>, transform_indices = @transform_1, window_bounds = array<i64: 128, 256>}, {transform_indices = @transform_2, window_bounds = array<i64: 16, 256>}]} {
    %c0 = arith.constant 0 : index
    %c0_0 = arith.constant 0 : index
    %0 = vector.load %arg1[%c0, %c0_0] : memref<16x128xbf16, #tpu.memory_space<vmem>>, vector<16x128xbf16>
    %c0_1 = arith.constant 0 : index
    %c0_2 = arith.constant 0 : index
    %1 = vector.load %arg2[%c0_1, %c0_2] : memref<128x256xbf16, #tpu.memory_space<vmem>>, vector<128x256xbf16>
    %cst = arith.constant dense<0.000000e+00> : vector<16x256xf32>
    %2 = tpu.matmul %0, %1, %cst {dimension_numbers = #tpu.dot_dimension_numbers<[1], [0], [0], [1], [0, 0, 1, 1], [], []>} : vector<16x128xbf16>, vector<128x256xbf16>, vector<16x256xf32> -> vector<16x256xf32>
    %3 = arith.truncf %2 : vector<16x256xf32> to vector<16x256xbf16>
    %c0_3 = arith.constant 0 : index
    %c0_4 = arith.constant 0 : index
    %4 = vector.load %arg3[%c0_3, %c0_4] : memref<16x256xbf16, #tpu.memory_space<vmem>>, vector<16x256xbf16>
    tpu.vector_store %arg3[%c0_3, %c0_4], %3 {strides = array<i32>} : memref<16x256xbf16, #tpu.memory_space<vmem>>, vector<16x256xbf16>,
    return
  }
  func.func @transform_0(%arg0: i32) -> (i32, i32) {
    %c0_i32 = arith.constant 0 : i32
    %c0_i32_0 = arith.constant 0 : i32
    return %arg0, %c0_i32 : i32, i32
  }
  func.func @transform_1(%arg0: i32) -> (i32, i32) {
    %c0_i32 = arith.constant 0 : i32
    %c0_i32_0 = arith.constant 0 : i32
    %c0_i32_1 = arith.constant 0 : i32
    return %c0_i32, %c0_i32_0 : i32, i32
  }
  func.func @transform_2(%arg0: i32) -> (i32, i32) {
    %c0_i32 = arith.constant 0 : i32
    %c0_i32_0 = arith.constant 0 : i32
    return %arg0, %c0_i32 : i32, i32
  }
}

</mosaic_0001>

<llo_original>
// kernel: tpu_custom_call.1
$region0: #{tpu_custom_call.1}
  #allocation0 [shape = 'u32[]', space=smem, size = 0x4, offset = 0x4, fixed_abs, tag = 'smem constant byte address 0x4 - core index']
  #allocation1 [shape = 'u32[144,128]{1,0:T(1,128)}', space=vmem, size = 0x12000, scoped, tag = 'internal scratch']
  %s0 = inlined_call_operand.hbm [shape: bf16[16,128], index: 0, kind: input, shape index: {}]
  %s1 = inlined_call_operand.hbm [shape: bf16[128,256], index: 1, kind: input, shape index: {}]
  %s2 = inlined_call_operand.hbm [shape: bf16[16,256], index: 2, kind: output, shape index: {}]
  %s3 = sld [smem:[#allocation0]]
  $region26: #{tpu_custom_call.1} parent=0
    _
  %s5 = ssub.s32 1, %s3
  %s6 = scalar_select 0, %s5, %s3
  $region1: #{tpu_custom_call.1} parent=0
    #allocation2 [shape = 'u8[4096]{0}', space=vmem, size = 0x1000, scoped, tag = 'input window, operand 0, single buffered']
    #allocation3 [shape = 's32[1]{0}', space=sflag, size = 0x4, scoped, tag = 'scoped memory for tpu_custom_call.1']
    #allocation4 [shape = 's32[1]{0}', space=sflag, size = 0x4, scoped, tag = 'scoped memory for tpu_custom_call.1']
    #allocation5 [shape = 'u8[65536]{0}', space=vmem, size = 0x10000, scoped, tag = 'input window, operand 1, single buffered']
    #allocation6 [shape = 's32[1]{0}', space=sflag, size = 0x4, scoped, tag = 'scoped memory for tpu_custom_call.1']
    #allocation7 [shape = 'u8[8192]{0}', space=vmem, size = 0x2000, scoped, tag = 'output window, operand 0, single buffered']
    %7 = vsyncpa [#allocation3], 0
    %8 = vsyncpa [#allocation6], 0
    %9 = vsyncpa [#allocation4], 0
    // Predicated region
    $region2: #{tpu_custom_call.1} parent=1 // pred_check
      _
    $region3: #{tpu_custom_call.1} parent=1 // pred_check_branch
      %11 = sbr.rel (0) target = $region5
    $region4: #{tpu_custom_call.1} parent=1 // pred_region
      %s13 = ssub.s32 128, 128
      %14 = vsyncadd [#allocation3], %s13
      %s15 = sshll.u32 [#allocation2], 4
      %s16 = int_to_ptr.vmem [resolvable:$true] %s15
      %21 = dma.hbm_to_vmem [thread:$0]  %s0, 128, %s16, [#allocation3], 64, 64, 4
    $region5: #{tpu_custom_call.1} parent=1 // pred_fallthru
      _
    // Predicated region
    $region6: #{tpu_custom_call.1} parent=1 // pred_check
      _
    $region7: #{tpu_custom_call.1} parent=1 // pred_check_branch
      %23 = sbr.rel (0) target = $region9
    $region8: #{tpu_custom_call.1} parent=1 // pred_region
      %s25 = ssub.s32 2048, 2048
      %26 = vsyncadd [#allocation6], %s25
      %s27 = sshll.u32 [#allocation5], 4
      %s28 = int_to_ptr.vmem [resolvable:$true] %s27
      %33 = dma.hbm_to_vmem [thread:$0]  %s1, 2048, %s28, [#allocation6], 128, 128, 8
    $region9: #{tpu_custom_call.1} parent=1 // pred_fallthru
      _
    // Predicated region
    $region10: #{tpu_custom_call.1} parent=1 // pred_check
      _
    $region11: #{tpu_custom_call.1} parent=1 // pred_check_branch
      %35 = sbr.rel (0) target = $region13
    $region12: #{tpu_custom_call.1} parent=1 // pred_region
      %36 = dma.done [#allocation3], 128
    $region13: #{tpu_custom_call.1} parent=1 // pred_fallthru
      _
    // Predicated region
    $region14: #{tpu_custom_call.1} parent=1 // pred_check
      _
    $region15: #{tpu_custom_call.1} parent=1 // pred_check_branch
      %38 = sbr.rel (0) target = $region17
    $region16: #{tpu_custom_call.1} parent=1 // pred_region
      %39 = dma.done [#allocation6], 2048
    $region17: #{tpu_custom_call.1} parent=1 // pred_fallthru
      _
    %v41 = vld [vmem:[#allocation2] sm:$0xf]
    %v42 = vld [vmem:[#allocation2 + $0x4] sm:$0xf]
    %v43 = vld [vmem:[#allocation5] sm:$0xff]
    %v44 = vld [vmem:[#allocation5 + $0x8] sm:$0xff]
    %v45 = vld [vmem:[#allocation5 + $0x10] sm:$0xff]
    %v46 = vld [vmem:[#allocation5 + $0x18] sm:$0xff]
    %v47 = vld [vmem:[#allocation5 + $0x20] sm:$0xff]
    %v48 = vld [vmem:[#allocation5 + $0x28] sm:$0xff]
    %v49 = vld [vmem:[#allocation5 + $0x30] sm:$0xff]
    %v50 = vld [vmem:[#allocation5 + $0x38] sm:$0xff]
    %v51 = vld [vmem:[#allocation5 + $0x40] sm:$0xff]
    %v52 = vld [vmem:[#allocation5 + $0x48] sm:$0xff]
    %v53 = vld [vmem:[#allocation5 + $0x50] sm:$0xff]
    %v54 = vld [vmem:[#allocation5 + $0x58] sm:$0xff]
    %v55 = vld [vmem:[#allocation5 + $0x60] sm:$0xff]
    %v56 = vld [vmem:[#allocation5 + $0x68] sm:$0xff]
    %v57 = vld [vmem:[#allocation5 + $0x70] sm:$0xff]
    %v58 = vld [vmem:[#allocation5 + $0x78] sm:$0xff]
    %v61 = vunpack.c.l.b16 %v41
    %v62 = vunpack.c.l.b16 %v42
    %v63 = vpack.c.b16 %v62, %v61
    %v81 = vunpack.c.l.b16 %v43
    %v82 = vunpack.c.h.b16 %v43
    %v83 = vunpack.c.l.b16 %v44
    %v84 = vunpack.c.h.b16 %v44
    %v85 = vunpack.c.l.b16 %v45
    %v86 = vunpack.c.h.b16 %v45
    %v87 = vunpack.c.l.b16 %v46
    %v88 = vunpack.c.h.b16 %v46
    %v89 = vunpack.c.l.b16 %v47
    %v90 = vunpack.c.h.b16 %v47
    %v91 = vunpack.c.l.b16 %v48
    %v92 = vunpack.c.h.b16 %v48
    %v93 = vunpack.c.l.b16 %v49
    %v94 = vunpack.c.h.b16 %v49
    %v95 = vunpack.c.l.b16 %v50
    %v96 = vunpack.c.h.b16 %v50
    %v97 = vunpack.c.l.b16 %v51
    %v98 = vunpack.c.h.b16 %v51
    %v99 = vunpack.c.l.b16 %v52
    %v100 = vunpack.c.h.b16 %v52
    %v101 = vunpack.c.l.b16 %v53
    %v102 = vunpack.c.h.b16 %v53
    %v103 = vunpack.c.l.b16 %v54
    %v104 = vunpack.c.h.b16 %v54
    %v105 = vunpack.c.l.b16 %v55
    %v106 = vunpack.c.h.b16 %v55
    %v107 = vunpack.c.l.b16 %v56
    %v108 = vunpack.c.h.b16 %v56
    %v109 = vunpack.c.l.b16 %v57
    %v110 = vunpack.c.h.b16 %v57
    %v111 = vunpack.c.l.b16 %v58
    %v112 = vunpack.c.h.b16 %v58
    %v113 = vpack.c.b16 %v83, %v81
    %v114 = vpack.c.b16 %v84, %v82
    %v115 = vpack.c.b16 %v87, %v85
    %v116 = vpack.c.b16 %v88, %v86
    %v117 = vpack.c.b16 %v91, %v89
    %v118 = vpack.c.b16 %v92, %v90
    %v119 = vpack.c.b16 %v95, %v93
    %v120 = vpack.c.b16 %v96, %v94
    %v121 = vpack.c.b16 %v99, %v97
    %v122 = vpack.c.b16 %v100, %v98
    %v123 = vpack.c.b16 %v103, %v101
    %v124 = vpack.c.b16 %v104, %v102
    %v125 = vpack.c.b16 %v107, %v105
    %v126 = vpack.c.b16 %v108, %v106
    %v127 = vpack.c.b16 %v111, %v109
    %v128 = vpack.c.b16 %v112, %v110
    %145 = vmatprep.subr.bf16.mxu0 %v114
    %146 = vmatpush1.bf16.msra.mxu0 %v113
    %147 = vmatprep.subr.bf16.mxu0 %v116
    %148 = vmatpush1.bf16.msra.mxu0 %v115
    %149 = vmatprep.subr.bf16.mxu0 %v118
    %150 = vmatpush1.bf16.msra.mxu0 %v117
    %151 = vmatprep.subr.bf16.mxu0 %v120
    %152 = vmatpush1.bf16.msra.mxu0 %v119
    %153 = vmatprep.subr.bf16.mxu0 %v122
    %154 = vmatpush1.bf16.msra.mxu0 %v121
    %155 = vmatprep.subr.bf16.mxu0 %v124
    %156 = vmatpush1.bf16.msra.mxu0 %v123
    %157 = vmatprep.subr.bf16.mxu0 %v126
    %158 = vmatpush1.bf16.msra.mxu0 %v125
    %159 = vmatprep.subr.bf16.mxu0 %v128
    %160 = vmatpush1.bf16.msra.mxu0 %v127
    %161 = vmatprep.subr.bf16.mxu0 0
    %162 = vmatpush1.bf16.msra.mxu0 0
    %163 = vmatprep.subr.bf16.mxu0 0
    %164 = vmatpush1.bf16.msra.mxu0 0
    %165 = vmatprep.subr.bf16.mxu0 0
    %166 = vmatpush1.bf16.msra.mxu0 0
    %167 = vmatprep.subr.bf16.mxu0 0
    %168 = vmatpush1.bf16.msra.mxu0 0
    %169 = vmatprep.subr.bf16.mxu0 0
    %170 = vmatpush1.bf16.msra.mxu0 0
    %171 = vmatprep.subr.bf16.mxu0 0
    %172 = vmatpush1.bf16.msra.mxu0 0
    %173 = vmatprep.subr.bf16.mxu0 0
    %174 = vmatpush1.bf16.msra.mxu0 0
    %175 = vmatprep.subr.bf16.mxu0 0
    %176 = vmatpush1.bf16.msra.mxu0 0
    %177 = vmatprep.mubr.bf16.mxu0 0
    %178 = vmatmul.mubr.bf16.gmra.mrb[0].mxu0 %v63
    %v179 = vpop.f32.mrb[0].mxu0
    %v180 = vadd.f32 0.0, %v179
    %v181 = vpop.f32.mrb[0].mxu0
    %v182 = vadd.f32 0.0, %v181
    %v183 = vpop.f32.mrb[0].mxu0
    %v184 = vadd.f32 0.0, %v183
    %v185 = vpop.f32.mrb[0].mxu0
    %v186 = vadd.f32 0.0, %v185
    %187 = vdwg.mxu0
    %v188 = vpack.c.bf16 %v184, %v180
    %v189 = vpack.c.bf16 %v186, %v182
    %v192 = vunpack.c.l.b16 %v188
    %v193 = vunpack.c.l.b16 %v189
    %v194 = vunpack.c.h.b16 %v188
    %v195 = vunpack.c.h.b16 %v189
    %v196 = vpack.c.b16 %v193, %v192
    %v197 = vpack.c.b16 %v195, %v194
    %200 = vst [vmem:[#allocation7] sm:$0xff] %v196
    %201 = vst [vmem:[#allocation7 + $0x8] sm:$0xff] %v197
    // Predicated region
    $region18: #{tpu_custom_call.1} parent=1 // pred_check
      _
    $region19: #{tpu_custom_call.1} parent=1 // pred_check_branch
      %203 = sbr.rel (0) target = $region21
    $region20: #{tpu_custom_call.1} parent=1 // pred_region
      %s205 = ssub.s32 256, 256
      %206 = vsyncadd [#allocation4], %s205
      %s207 = sshll.u32 [#allocation7], 4
      %s208 = int_to_ptr.vmem [resolvable:$true] %s207
      %213 = dma.vmem_to_hbm [thread:$0]  %s208, 256, %s2, [#allocation4], 128, 128, 8
    $region21: #{tpu_custom_call.1} parent=1 // pred_fallthru
      _
    // Predicated region
    $region22: #{tpu_custom_call.1} parent=1 // pred_check
      _
    $region23: #{tpu_custom_call.1} parent=1 // pred_check_branch
      %215 = sbr.rel (0) target = $region25
    $region24: #{tpu_custom_call.1} parent=1 // pred_region
      %216 = dma.done [#allocation4], 256
    $region25: #{tpu_custom_call.1} parent=1 // pred_fallthru
      _
    %217 = vsyncpa [#allocation3], 1
    %218 = vsyncpa [#allocation6], 1
    %219 = vsyncpa [#allocation4], 1

</llo_original>
